<compile_context>
chip_gen: v7x
topology: tpu7x:2x2x1
jax: 0.10.0
libtpu: 0.0.40
codegen_flags: <defaults>
</compile_context>

<pallas_src>
import functools

import jax
import jax.numpy as jnp
from jax.experimental import pallas as pl
from jax.experimental.pallas import tpu as pltpu


def _round_up(n, m):
    return ((n + m - 1) // m) * m


def _net_kernel(x_ref, w1_ref, w2_ref, b_ref, o_ref, *, hp, op):
    # hidden = relu(x @ W1 + b1)   -- f32 accumulation on the MXU
    h = jnp.dot(x_ref[...], w1_ref[...], preferred_element_type=jnp.float32)
    h = jnp.maximum(h + b_ref[0:1, :hp], 0.0)
    # out = hidden @ W2 + b2       -- no activation, matches the torch module
    y = jnp.dot(h, w2_ref[...], preferred_element_type=jnp.float32)
    o_ref[...] = (y + b_ref[1:2, :op]).astype(o_ref.dtype)


@functools.partial(jax.jit, static_argnames=("tn",))
def net_forward(x, w1, b1, w2, b2, *, tn=None):
    """Forward pass of Net: relu(x @ w1 + b1) @ w2 + b2.

    x:  (N, F) float32
    w1: (F, H)   b1: (H,)
    w2: (H, O)   b2: (O,)
    """
    N, F = x.shape
    H = w1.shape[1]
    O = w2.shape[1]

    # Lane-pad hidden/output widths to multiples of 128.
    Hp = _round_up(H, 128)
    Op = _round_up(O, 128)
    Bp = max(Hp, Op)

    w1p = jnp.zeros((F, Hp), x.dtype).at[:, :H].set(w1)
    w2p = jnp.zeros((Hp, Op), x.dtype).at[:H, :O].set(w2)
    bp = jnp.zeros((2, Bp), x.dtype)
    bp = bp.at[0, :H].set(jnp.reshape(b1, (H,)))
    bp = bp.at[1, :O].set(jnp.reshape(b2, (O,)))

    # Batch tile: multiple of 8 sublanes, up to 512 rows by default. With
    # Hp = Op = 128 the double-buffered x/out tiles are well under 1 MiB,
    # comfortably inside the scoped VMEM limit on v5e/v6e/v7x.
    if tn is None:
        tn = min(512, _round_up(N, 8))
    tn = max(8, _round_up(min(tn, N), 8))
    N_pad = _round_up(N, tn)
    if N_pad != N:
        x = jnp.zeros((N_pad, F), x.dtype).at[:N, :].set(x)

    grid = (N_pad // tn,)

    out_padded = pl.pallas_call(
        functools.partial(_net_kernel, hp=Hp, op=Op),
        out_shape=jax.ShapeDtypeStruct((N_pad, Op), x.dtype),
        grid=grid,
        in_specs=[
            pl.BlockSpec((tn, F), lambda i: (i, 0)),    # x: streamed over batch tiles
            pl.BlockSpec((F, Hp), lambda i: (0, 0)),    # W1: VMEM-resident
            pl.BlockSpec((Hp, Op), lambda i: (0, 0)),   # W2: VMEM-resident
            pl.BlockSpec((2, Bp), lambda i: (0, 0)),    # [b1; b2]: VMEM-resident
        ],
        out_specs=pl.BlockSpec((tn, Op), lambda i: (i, 0)),
        compiler_params=pltpu.CompilerParams(
            dimension_semantics=("parallel",),          # shard batch tiles over TCs
            vmem_limit_bytes=32 * 1024 * 1024,
        ),
    )(x, w1p, w2p, bp)

    # Slice away batch padding and lane padding of the output.
    return out_padded[:N, :O]


def init_params(key, n_feature, n_hidden, n_output):
    """Deterministic init mimicking torch.nn.Linear's uniform(-1/sqrt(fan_in), +)."""
    k1, k2, k3, k4 = jax.random.split(key, 4)
    lim1 = 1.0 / jnp.sqrt(float(n_feature))
    lim2 = 1.0 / jnp.sqrt(float(n_hidden))
    w1 = jax.random.uniform(k1, (n_feature, n_hidden), jnp.float32, -lim1, lim1)
    b1 = jax.random.uniform(k2, (n_hidden,), jnp.float32, -lim1, lim1)
    w2 = jax.random.uniform(k3, (n_hidden, n_output), jnp.float32, -lim2, lim2)
    b2 = jax.random.uniform(k4, (n_output,), jnp.float32, -lim2, lim2)
    return w1, b1, w2, b2


if __name__ == "__main__":
    # Shapes from the original script: Net(n_feature=2, n_hidden=10, n_output=2),
    # data = 100 samples around +2 and 100 around -2.
    n_feature, n_hidden, n_output = 2, 10, 2
    batch = 200

    key = jax.random.PRNGKey(0)
    kx0, kx1, kp = jax.random.split(key, 3)

    half = batch // 2
    x0 = 2.0 + jax.random.normal(kx0, (half, n_feature), jnp.float32)
    x1 = -2.0 + jax.random.normal(kx1, (half, n_feature), jnp.float32)
    x = jnp.concatenate([x0, x1], axis=0)

    w1, b1, w2, b2 = init_params(kp, n_feature, n_hidden, n_output)

    # tn=128 -> 2 grid steps at N=200 (exercises the batch grid / padding path).
    out = net_forward(x, w1, b1, w2, b2, tn=128)
    out = jax.block_until_ready(out)

    # Reference check in plain JAX (same math) to validate the kernel.
    ref = jnp.maximum(x @ w1 + b1, 0.0) @ w2 + b2
    assert out.shape == (batch, n_output)
    assert jnp.allclose(out, ref, atol=1e-5, rtol=1e-5)

    print("KERNEL_OK")
</pallas_src>

<mosaic_0001>
module attributes {stable_mosaic.version = 11 : i64} {
  func.func @_net_kernel(%arg0: i32, %arg1: memref<128x2xf32, #tpu.memory_space<vmem>>, %arg2: memref<2x128xf32, #tpu.memory_space<vmem>>, %arg3: memref<128x128xf32, #tpu.memory_space<vmem>>, %arg4: memref<2x128xf32, #tpu.memory_space<vmem>>, %arg5: memref<128x128xf32, #tpu.memory_space<vmem>>) attributes {dimension_semantics = [#tpu.dimension_semantics<parallel>], iteration_bounds = array<i64: 2>, scalar_prefetch = 0 : i64, scratch_operands = 0 : i64, tpu.core_type = #tpu.core_type<tc>, window_params = [{transform_indices = @transform_0, window_bounds = array<i64: 128, 2>}, {pipeline_mode = #tpu.pipeline_mode<synchronous>, transform_indices = @transform_1, window_bounds = array<i64: 2, 128>}, {pipeline_mode = #tpu.pipeline_mode<synchronous>, transform_indices = @transform_2, window_bounds = array<i64: 128, 128>}, {pipeline_mode = #tpu.pipeline_mode<synchronous>, transform_indices = @transform_3, window_bounds = array<i64: 2, 128>}, {transform_indices = @transform_4, window_bounds = array<i64: 128, 128>}]} {
    %c0 = arith.constant 0 : index
    %c0_0 = arith.constant 0 : index
    %0 = vector.load %arg1[%c0, %c0_0] : memref<128x2xf32, #tpu.memory_space<vmem>>, vector<128x2xf32>
    %c0_1 = arith.constant 0 : index
    %c0_2 = arith.constant 0 : index
    %1 = vector.load %arg2[%c0_1, %c0_2] : memref<2x128xf32, #tpu.memory_space<vmem>>, vector<2x128xf32>
    %cst = arith.constant dense<0.000000e+00> : vector<128x128xf32>
    %2 = tpu.matmul %0, %1, %cst {dimension_numbers = #tpu.dot_dimension_numbers<[1], [0], [0], [1], [0, 0, 1, 1], [], []>} : vector<128x2xf32>, vector<2x128xf32>, vector<128x128xf32> -> vector<128x128xf32>
    %c0_3 = arith.constant 0 : index
    %c0_4 = arith.constant 0 : index
    %3 = vector.load %arg4[%c0_3, %c0_4] : memref<2x128xf32, #tpu.memory_space<vmem>>, vector<1x128xf32>
    %4 = vector.broadcast %3 : vector<1x128xf32> to vector<128x128xf32>
    %5 = arith.addf %2, %4 : vector<128x128xf32>
    %cst_5 = arith.constant 0.000000e+00 : f32
    %6 = vector.broadcast %cst_5 : f32 to vector<128x128xf32>
    %7 = arith.maximumf %5, %6 : vector<128x128xf32>
    %c0_6 = arith.constant 0 : index
    %c0_7 = arith.constant 0 : index
    %8 = vector.load %arg3[%c0_6, %c0_7] : memref<128x128xf32, #tpu.memory_space<vmem>>, vector<128x128xf32>
    %cst_8 = arith.constant dense<0.000000e+00> : vector<128x128xf32>
    %9 = tpu.matmul %7, %8, %cst_8 {dimension_numbers = #tpu.dot_dimension_numbers<[1], [0], [0], [1], [0, 0, 1, 1], [], []>} : vector<128x128xf32>, vector<128x128xf32>, vector<128x128xf32> -> vector<128x128xf32>
    %c1 = arith.constant 1 : index
    %c0_9 = arith.constant 0 : index
    %10 = vector.load %arg4[%c1, %c0_9] : memref<2x128xf32, #tpu.memory_space<vmem>>, vector<1x128xf32>
    %11 = vector.broadcast %10 : vector<1x128xf32> to vector<128x128xf32>
    %12 = arith.addf %9, %11 : vector<128x128xf32>
    %c0_10 = arith.constant 0 : index
    %c0_11 = arith.constant 0 : index
    %13 = vector.load %arg5[%c0_10, %c0_11] : memref<128x128xf32, #tpu.memory_space<vmem>>, vector<128x128xf32>
    tpu.vector_store %arg5[%c0_10, %c0_11], %12 {strides = array<i32>} : memref<128x128xf32, #tpu.memory_space<vmem>>, vector<128x128xf32>,
    return
  }
  func.func @transform_0(%arg0: i32) -> (i32, i32) {
    %c0_i32 = arith.constant 0 : i32
    %c0_i32_0 = arith.constant 0 : i32
    return %arg0, %c0_i32 : i32, i32
  }
  func.func @transform_1(%arg0: i32) -> (i32, i32) {
    %c0_i32 = arith.constant 0 : i32
    %c0_i32_0 = arith.constant 0 : i32
    %c0_i32_1 = arith.constant 0 : i32
    return %c0_i32, %c0_i32_0 : i32, i32
  }
  func.func @transform_2(%arg0: i32) -> (i32, i32) {
    %c0_i32 = arith.constant 0 : i32
    %c0_i32_0 = arith.constant 0 : i32
    %c0_i32_1 = arith.constant 0 : i32
    return %c0_i32, %c0_i32_0 : i32, i32
  }
  func.func @transform_3(%arg0: i32) -> (i32, i32) {
    %c0_i32 = arith.constant 0 : i32
    %c0_i32_0 = arith.constant 0 : i32
    %c0_i32_1 = arith.constant 0 : i32
    return %c0_i32, %c0_i32_0 : i32, i32
  }
  func.func @transform_4(%arg0: i32) -> (i32, i32) {
    %c0_i32 = arith.constant 0 : i32
    %c0_i32_0 = arith.constant 0 : i32
    return %arg0, %c0_i32 : i32, i32
  }
}

</mosaic_0001>

<llo_original>
// kernel: net_forward.1
$region0: #{net_forward.1}
  #allocation0 [shape = 'u32[]', space=smem, size = 0x4, offset = 0x4, fixed_abs, tag = 'smem constant byte address 0x4 - core index']
  #allocation1 [shape = 'u32[144,128]{1,0:T(1,128)}', space=vmem, size = 0x12000, scoped, tag = 'internal scratch']
  %s0 = inlined_call_operand.vmem [shape: f32[256,2], index: 0, kind: input, shape index: {}]
  %s1 = inlined_call_operand.vmem [shape: f32[2,128], index: 1, kind: input, shape index: {}]
  %s2 = inlined_call_operand.vmem [shape: f32[128,128], index: 2, kind: input, shape index: {}]
  %s3 = inlined_call_operand.vmem [shape: f32[2,128], index: 3, kind: input, shape index: {}]
  %s4 = inlined_call_operand.vmem [shape: f32[256,128], index: 4, kind: output, shape index: {}]
  %s5 = sld [smem:[#allocation0]]
  $region49: #{net_forward.1} parent=0
    _
  %s7 = ssub.s32 1, %s5
  %s8 = scalar_select 0, %s7, %s5
  loop: start=0, step=1, limit=4
  $region2: #{net_forward.1} parent=0 // loop_pre_header
    _
  $region3: #{net_forward.1} parent=0 // loop_header
    %s10 = sphi 0, %s14
    %p11 = scmp.ge.s32.totalorder %s10, 4
    %s20 = sphi 0, %s22
    %s23 = sphi 0, %s20
    %s24 = sphi 0, %s23
    %s40 = sphi 0, %s24
    %s44 = sphi 0, %s44
    %s46 = sphi 0, %s44
    %s47 = sphi 0, %s46
    %s61 = sphi 0, %s47
    %s65 = sphi 0, %s65
    %s67 = sphi 0, %s65
    %s68 = sphi 0, %s67
    %s82 = sphi 0, %s68
    %s86 = sphi 0, %s86
    %s88 = sphi 0, %s86
    %s89 = sphi 0, %s88
    %s103 = sphi 0, %s89
    %s109 = sphi 0, %s111
    %s112 = sphi 0, %s109
    %s113 = sphi 0, %s112
    %s129 = sphi 0, %s113
  $region4: #{net_forward.1} parent=0 // loop_header_branch
    %13 = sbr.rel (%p11) target = $region8
  $region5: #{net_forward.1} parent=0 // loop_body
    %s15 = ssub.s32 %s10, 1
    %s16 = ssub.s32 %s10, 2
    %s17 = sadd.s32 %s10, 1
    %s18 = ssub.s32 %s10, %s17
    %p19 = scmp.eq.s32.totalorder %s18, 0
    %s21 = sadd.s32 %s20, 1
    %s22 = scalar_select %p19, %s20, %s21
    %p25 = pneg %p19
    %p26 = scmp.eq.s32.totalorder %s10, 1
    %p27 = por %p25, %p26
    %p28 = scmp.ne.s32.totalorder %s20, %s23
    %p29 = scmp.eq.s32.totalorder %s10, 0
    %p30 = por %p28, %p29
    %p31 = scmp.ne.s32.totalorder %s20, %s23
    %p32 = scmp.eq.s32.totalorder %s15, 1
    %p33 = por %p31, %p32
    %p34 = scmp.ne.s32.totalorder %s23, %s24
    %p35 = scmp.eq.s32.totalorder %s15, 0
    %p36 = por %p34, %p35
    %p37 = scmp.ne.s32.totalorder %s23, %s24
    %p38 = scmp.eq.s32.totalorder %s16, 1
    %p39 = por %p37, %p38
    %p41 = scmp.ne.s32.totalorder %s24, %s40
    %p42 = scmp.eq.s32.totalorder %s16, 0
    %p43 = por %p41, %p42
    %s45 = sadd.s32 %s44, 1
    %p48 = scmp.eq.s32.totalorder %s10, 1
    %p49 = scmp.ne.s32.totalorder %s44, %s46
    %p50 = scmp.eq.s32.totalorder %s10, 0
    %p51 = por %p49, %p50
    %p52 = scmp.ne.s32.totalorder %s44, %s46
    %p53 = scmp.eq.s32.totalorder %s15, 1
    %p54 = por %p52, %p53
    %p55 = scmp.ne.s32.totalorder %s46, %s47
    %p56 = scmp.eq.s32.totalorder %s15, 0
    %p57 = por %p55, %p56
    %p58 = scmp.ne.s32.totalorder %s46, %s47
    %p59 = scmp.eq.s32.totalorder %s16, 1
    %p60 = por %p58, %p59
    %p62 = scmp.ne.s32.totalorder %s47, %s61
    %p63 = scmp.eq.s32.totalorder %s16, 0
    %p64 = por %p62, %p63
    %s66 = sadd.s32 %s65, 1
    %p69 = scmp.eq.s32.totalorder %s10, 1
    %p70 = scmp.ne.s32.totalorder %s65, %s67
    %p71 = scmp.eq.s32.totalorder %s10, 0
    %p72 = por %p70, %p71
    %p73 = scmp.ne.s32.totalorder %s65, %s67
    %p74 = scmp.eq.s32.totalorder %s15, 1
    %p75 = por %p73, %p74
    %p76 = scmp.ne.s32.totalorder %s67, %s68
    %p77 = scmp.eq.s32.totalorder %s15, 0
    %p78 = por %p76, %p77
    %p79 = scmp.ne.s32.totalorder %s67, %s68
    %p80 = scmp.eq.s32.totalorder %s16, 1
    %p81 = por %p79, %p80
    %p83 = scmp.ne.s32.totalorder %s68, %s82
    %p84 = scmp.eq.s32.totalorder %s16, 0
    %p85 = por %p83, %p84
    %s87 = sadd.s32 %s86, 1
    %p90 = scmp.eq.s32.totalorder %s10, 1
    %p91 = scmp.ne.s32.totalorder %s86, %s88
    %p92 = scmp.eq.s32.totalorder %s10, 0
    %p93 = por %p91, %p92
    %p94 = scmp.ne.s32.totalorder %s86, %s88
    %p95 = scmp.eq.s32.totalorder %s15, 1
    %p96 = por %p94, %p95
    %p97 = scmp.ne.s32.totalorder %s88, %s89
    %p98 = scmp.eq.s32.totalorder %s15, 0
    %p99 = por %p97, %p98
    %p100 = scmp.ne.s32.totalorder %s88, %s89
    %p101 = scmp.eq.s32.totalorder %s16, 1
    %p102 = por %p100, %p101
    %p104 = scmp.ne.s32.totalorder %s89, %s103
    %p105 = scmp.eq.s32.totalorder %s16, 0
    %p106 = por %p104, %p105
    %s107 = ssub.s32 %s10, %s17
    %p108 = scmp.eq.s32.totalorder %s107, 0
    %s110 = sadd.s32 %s109, 1
    %s111 = scalar_select %p108, %s109, %s110
    %p114 = pneg %p108
    %p115 = scmp.eq.s32.totalorder %s10, 1
    %p116 = por %p114, %p115
    %p117 = scmp.ne.s32.totalorder %s109, %s112
    %p118 = scmp.eq.s32.totalorder %s10, 0
    %p119 = por %p117, %p118
    %p120 = scmp.ne.s32.totalorder %s109, %s112
    %p121 = scmp.eq.s32.totalorder %s15, 1
    %p122 = por %p120, %p121
    %p123 = scmp.ne.s32.totalorder %s112, %s113
    %p124 = scmp.eq.s32.totalorder %s15, 0
    %p125 = por %p123, %p124
    %p126 = scmp.ne.s32.totalorder %s112, %s113
    %p127 = scmp.eq.s32.totalorder %s16, 1
    %p128 = por %p126, %p127
    %p130 = scmp.ne.s32.totalorder %s113, %s129
    %p131 = scmp.eq.s32.totalorder %s16, 0
    %p132 = por %p130, %p131
    %p133 = scmp.le.s32.totalorder 1, %s10
    %p134 = scmp.lt.s32.totalorder %s10, 3
    %p135 = pnand %p133, %p134
    %p136 = pneg %p135
    // Predicated region
    $region9: #{net_forward.1} parent=5 // pred_check
      _
    $region10: #{net_forward.1} parent=5 // pred_check_branch
      %138 = sbr.rel (%p135) target = $region12
    $region11: #{net_forward.1} parent=5 // pred_region
      %s139 = ssub.s32 %s10, 1
      // Predicated region
      $region13: #{net_forward.1} parent=11 // pred_check
        %p140 = pneg %p57
      $region14: #{net_forward.1} parent=11 // pred_check_branch
        %142 = sbr.rel (%p140) target = $region16
      $region15: #{net_forward.1} parent=11 // pred_region
        _
      $region16: #{net_forward.1} parent=11 // pred_fallthru
        _
      // Predicated region
      $region17: #{net_forward.1} parent=11 // pred_check
        %p143 = pneg %p78
      $region18: #{net_forward.1} parent=11 // pred_check_branch
        %145 = sbr.rel (%p143) target = $region20
      $region19: #{net_forward.1} parent=11 // pred_region
        _
      $region20: #{net_forward.1} parent=11 // pred_fallthru
        _
      // Predicated region
      $region21: #{net_forward.1} parent=11 // pred_check
        %p146 = pneg %p99
      $region22: #{net_forward.1} parent=11 // pred_check_branch
        %148 = sbr.rel (%p146) target = $region24
      $region23: #{net_forward.1} parent=11 // pred_region
        _
      $region24: #{net_forward.1} parent=11 // pred_fallthru
        _
    $region12: #{net_forward.1} parent=5 // pred_fallthru
      _
    %p149 = scmp.lt.s32.totalorder %s10, 2
    // Predicated region
    $region25: #{net_forward.1} parent=5 // pred_check
      %p150 = pneg %p149
    $region26: #{net_forward.1} parent=5 // pred_check_branch
      %152 = sbr.rel (%p150) target = $region28
    $region27: #{net_forward.1} parent=5 // pred_region
      // Predicated region
      $region29: #{net_forward.1} parent=27 // pred_check
        %p153 = pneg %p30
      $region30: #{net_forward.1} parent=27 // pred_check_branch
        %155 = sbr.rel (%p153) target = $region32
      $region31: #{net_forward.1} parent=27 // pred_region
        %s156 = smul.u32 16, %s10
        %p157 = scmp.lt.s32.totalorder %s156, 31
        %s158 = scalar_select %p157, %s156, 31
        %s159 = smul.addr %s158, 8
        %s160 = scalar_lea.vmem %s0, %s159
        %s161 = smul.u32 16, %s10
      $region32: #{net_forward.1} parent=27 // pred_fallthru
        _
    $region28: #{net_forward.1} parent=5 // pred_fallthru
      _
    %p162 = scmp.le.s32.totalorder 1, %s10
    %p163 = scmp.lt.s32.totalorder %s10, 3
    %p164 = pnand %p162, %p163
    %p165 = pneg %p164
    // Predicated region
    $region33: #{net_forward.1} parent=5 // pred_check
      _
    $region34: #{net_forward.1} parent=5 // pred_check_branch
      %167 = sbr.rel (%p164) target = $region36
    $region35: #{net_forward.1} parent=5 // pred_region
      %s168 = ssub.s32 %s10, 1
      %s169 = smul.u32 16, %s15
      %p170 = scmp.lt.s32.totalorder %s169, 31
      %s171 = scalar_select %p170, %s169, 31
      %s172 = smul.addr %s171, 8
      %s173 = scalar_lea.vmem %s0, %s172
      %p174 = pneg %p36
      %p175 = pneg %p33
      %p176 = pneg %p57
      %p177 = pneg %p54
      %p178 = pneg %p78
      %p179 = pneg %p75
      %p180 = pneg %p99
      %p181 = pneg %p96
      %p182 = pneg %p125
      %p183 = pneg %p122
      %s184 = smul.u32 16, %s15
      %p185 = scmp.lt.s32.totalorder %s184, 31
      %s186 = scalar_select %p185, %s184, 31
      %s187 = smul.addr %s186, 8
      %s188 = scalar_lea.vmem %s4, %s187
      %s189 = smul.u32 16, %s15
      %p190 = scmp.lt.s32.totalorder %s189, 31
      %s191 = scalar_select %p190, %s189, 31
      %s192 = smul.addr %s191, 8
      %s193 = scalar_lea.vmem %s0, %s192
      %s194 = smul.u32 16, %s15
      %s195 = smul.u32 16, %s15
      %p196 = scmp.lt.s32.totalorder %s195, 31
      %s197 = scalar_select %p196, %s195, 31
      %s198 = smul.addr %s197, 8
      %s199 = scalar_lea.vmem %s4, %s198
      %s200 = smul.u32 16, %s15
      %v201 = vld [vmem:[%s193] sm:$0xff]
      %v202 = vld [vmem:[%s193 + $0x8] sm:$0xff]
      %v203 = vld [vmem:[%s193 + $0x10] sm:$0xff]
      %v204 = vld [vmem:[%s193 + $0x18] sm:$0xff]
      %v205 = vld [vmem:[%s193 + $0x20] sm:$0xff]
      %v206 = vld [vmem:[%s193 + $0x28] sm:$0xff]
      %v207 = vld [vmem:[%s193 + $0x30] sm:$0xff]
      %v208 = vld [vmem:[%s193 + $0x38] sm:$0xff]
      %v209 = vld [vmem:[%s193 + $0x40] sm:$0xff]
      %v210 = vld [vmem:[%s193 + $0x48] sm:$0xff]
      %v211 = vld [vmem:[%s193 + $0x50] sm:$0xff]
      %v212 = vld [vmem:[%s193 + $0x58] sm:$0xff]
      %v213 = vld [vmem:[%s193 + $0x60] sm:$0xff]
      %v214 = vld [vmem:[%s193 + $0x68] sm:$0xff]
      %v215 = vld [vmem:[%s193 + $0x70] sm:$0xff]
      %v216 = vld [vmem:[%s193 + $0x78] sm:$0xff]
      %v217 = vld [vmem:[%s1] sm:$0x3]
      %v218 = vld [vmem:[%s3] sm:$0x1]
      %v219 = vlaneseq
      %v220 = vshrl.u32 %v219, 7
      %v221 = vsub.s32 0, %v220
      %v222 = vrot.slane %v218, %v221
      %vm223 = vcmask 15360
      %v225 = vsel %vm223, %v201, 0
      %v228 = vsel %vm223, %v202, 0
      %v231 = vsel %vm223, %v203, 0
      %v234 = vsel %vm223, %v204, 0
      %v237 = vsel %vm223, %v205, 0
      %v240 = vsel %vm223, %v206, 0
      %v243 = vsel %vm223, %v207, 0
      %v246 = vsel %vm223, %v208, 0
      %v249 = vsel %vm223, %v209, 0
      %v252 = vsel %vm223, %v210, 0
      %v255 = vsel %vm223, %v211, 0
      %v258 = vsel %vm223, %v212, 0
      %v261 = vsel %vm223, %v213, 0
      %v264 = vsel %vm223, %v214, 0
      %v267 = vsel %vm223, %v215, 0
      %v270 = vsel %vm223, %v216, 0
      %vm272 = vcmask 1041408
      %v274 = vsel %vm272, %v217, 0
      %276 = vmatprep.subr.mxu0 0.0
      %277 = vmatpush1.msra.mxu0 %v274
      %278 = vmatprep.subr.mxu0 0.0
      %279 = vmatpush1.msra.mxu0 0.0
      %280 = vmatprep.subr.mxu0 0.0
      %281 = vmatpush1.msra.mxu0 0.0
      %282 = vmatprep.subr.mxu0 0.0
      %283 = vmatpush1.msra.mxu0 0.0
      %284 = vmatprep.subr.mxu0 0.0
      %285 = vmatpush1.msra.mxu0 0.0
      %286 = vmatprep.subr.mxu0 0.0
      %287 = vmatpush1.msra.mxu0 0.0
      %288 = vmatprep.subr.mxu0 0.0
      %289 = vmatpush1.msra.mxu0 0.0
      %290 = vmatprep.subr.mxu0 0.0
      %291 = vmatpush1.msra.mxu0 0.0
      %292 = vmatprep.subr.mxu0 0.0
      %293 = vmatpush1.msra.mxu0 0.0
      %294 = vmatprep.subr.mxu0 0.0
      %295 = vmatpush1.msra.mxu0 0.0
      %296 = vmatprep.subr.mxu0 0.0
      %297 = vmatpush1.msra.mxu0 0.0
      %298 = vmatprep.subr.mxu0 0.0
      %299 = vmatpush1.msra.mxu0 0.0
      %300 = vmatprep.subr.mxu0 0.0
      %301 = vmatpush1.msra.mxu0 0.0
      %302 = vmatprep.subr.mxu0 0.0
      %303 = vmatpush1.msra.mxu0 0.0
      %304 = vmatprep.subr.mxu0 0.0
      %305 = vmatpush1.msra.mxu0 0.0
      %306 = vmatprep.subr.mxu0 0.0
      %307 = vmatpush1.msra.mxu0 0.0
      %308 = vmatprep.subr.mxu0 0.0
      %309 = vmatpush1.msra.mxu0 0.0
      %310 = vmatprep.subr.mxu0 0.0
      %311 = vmatpush1.msra.mxu0 0.0
      %312 = vmatprep.subr.mxu0 0.0
      %313 = vmatpush1.msra.mxu0 0.0
      %314 = vmatprep.subr.mxu0 0.0
      %315 = vmatpush1.msra.mxu0 0.0
      %316 = vmatprep.subr.mxu0 0.0
      %317 = vmatpush1.msra.mxu0 0.0
      %318 = vmatprep.subr.mxu0 0.0
      %319 = vmatpush1.msra.mxu0 0.0
      %320 = vmatprep.subr.mxu0 0.0
      %321 = vmatpush1.msra.mxu0 0.0
      %322 = vmatprep.subr.mxu0 0.0
      %323 = vmatpush1.msra.mxu0 0.0
      %324 = vmatprep.subr.mxu0 0.0
      %325 = vmatpush1.msra.mxu0 0.0
      %326 = vmatprep.subr.mxu0 0.0
      %327 = vmatpush1.msra.mxu0 0.0
      %328 = vmatprep.subr.mxu0 0.0
      %329 = vmatpush1.msra.mxu0 0.0
      %330 = vmatprep.subr.mxu0 0.0
      %331 = vmatpush1.msra.mxu0 0.0
      %332 = vmatprep.subr.mxu0 0.0
      %333 = vmatpush1.msra.mxu0 0.0
      %334 = vmatprep.subr.mxu0 0.0
      %335 = vmatpush1.msra.mxu0 0.0
      %336 = vmatprep.subr.mxu0 0.0
      %337 = vmatpush1.msra.mxu0 0.0
      %338 = vmatprep.subr.mxu0 0.0
      %339 = vmatpush1.msra.mxu0 0.0
      %340 = vmatprep.mubr.f32.mxu0 0.0
      %341 = vmatmul.mubr.f32.gmra.mrb[0].mxu0 %v225
      %v342 = vpop.f32.mrb[0].mxu0
      %v343 = vadd.f32 %v222, %v342
      %v344 = vpop.f32.mrb[0].mxu0
      %345 = vmatprep.mubr.f32.mxu0 0.0
      %346 = vmatmul.mubr.f32.gmra.mrb[0].mxu0 %v228
      %v347 = vpop.f32.mrb[0].mxu0
      %v348 = vadd.f32 %v222, %v347
      %v349 = vpop.f32.mrb[0].mxu0
      %350 = vmatprep.mubr.f32.mxu0 0.0
      %351 = vmatmul.mubr.f32.gmra.mrb[0].mxu0 %v231
      %v352 = vpop.f32.mrb[0].mxu0
      %v353 = vadd.f32 %v222, %v352
      %v354 = vpop.f32.mrb[0].mxu0
      %355 = vmatprep.mubr.f32.mxu0 0.0
      %356 = vmatmul.mubr.f32.gmra.mrb[0].mxu0 %v234
      %v357 = vpop.f32.mrb[0].mxu0
      %v358 = vadd.f32 %v222, %v357
      %v359 = vpop.f32.mrb[0].mxu0
      %360 = vmatprep.mubr.f32.mxu0 0.0
      %361 = vmatmul.mubr.f32.gmra.mrb[0].mxu0 %v237
      %v362 = vpop.f32.mrb[0].mxu0
      %v363 = vadd.f32 %v222, %v362
      %v364 = vpop.f32.mrb[0].mxu0
      %365 = vmatprep.mubr.f32.mxu0 0.0
      %366 = vmatmul.mubr.f32.gmra.mrb[0].mxu0 %v240
      %v367 = vpop.f32.mrb[0].mxu0
      %v368 = vadd.f32 %v222, %v367
      %v369 = vpop.f32.mrb[0].mxu0
      %370 = vmatprep.mubr.f32.mxu0 0.0
      %371 = vmatmul.mubr.f32.gmra.mrb[0].mxu0 %v243
      %v372 = vpop.f32.mrb[0].mxu0
      %v373 = vadd.f32 %v222, %v372
      %v374 = vpop.f32.mrb[0].mxu0
      %375 = vmatprep.mubr.f32.mxu0 0.0
      %376 = vmatmul.mubr.f32.gmra.mrb[0].mxu0 %v246
      %v377 = vpop.f32.mrb[0].mxu0
      %v378 = vadd.f32 %v222, %v377
      %v379 = vpop.f32.mrb[0].mxu0
      %380 = vmatprep.mubr.f32.mxu0 0.0
      %381 = vmatmul.mubr.f32.gmra.mrb[0].mxu0 %v249
      %v382 = vpop.f32.mrb[0].mxu0
      %v383 = vadd.f32 %v222, %v382
      %v384 = vpop.f32.mrb[0].mxu0
      %385 = vmatprep.mubr.f32.mxu0 0.0
      %386 = vmatmul.mubr.f32.gmra.mrb[0].mxu0 %v252
      %v387 = vpop.f32.mrb[0].mxu0
      %v388 = vadd.f32 %v222, %v387
      %v389 = vpop.f32.mrb[0].mxu0
      %390 = vmatprep.mubr.f32.mxu0 0.0
      %391 = vmatmul.mubr.f32.gmra.mrb[0].mxu0 %v255
      %v392 = vpop.f32.mrb[0].mxu0
      %v393 = vadd.f32 %v222, %v392
      %v394 = vpop.f32.mrb[0].mxu0
      %395 = vmatprep.mubr.f32.mxu0 0.0
      %396 = vmatmul.mubr.f32.gmra.mrb[0].mxu0 %v258
      %v397 = vpop.f32.mrb[0].mxu0
      %v398 = vadd.f32 %v222, %v397
      %v399 = vpop.f32.mrb[0].mxu0
      %400 = vmatprep.mubr.f32.mxu0 0.0
      %401 = vmatmul.mubr.f32.gmra.mrb[0].mxu0 %v261
      %v402 = vpop.f32.mrb[0].mxu0
      %v403 = vadd.f32 %v222, %v402
      %v404 = vpop.f32.mrb[0].mxu0
      %405 = vmatprep.mubr.f32.mxu0 0.0
      %406 = vmatmul.mubr.f32.gmra.mrb[0].mxu0 %v264
      %v407 = vpop.f32.mrb[0].mxu0
      %v408 = vadd.f32 %v222, %v407
      %v409 = vpop.f32.mrb[0].mxu0
      %410 = vmatprep.mubr.f32.mxu0 0.0
      %411 = vmatmul.mubr.f32.gmra.mrb[0].mxu0 %v267
      %v412 = vpop.f32.mrb[0].mxu0
      %v413 = vadd.f32 %v222, %v412
      %v414 = vpop.f32.mrb[0].mxu0
      %415 = vmatprep.mubr.f32.mxu0 0.0
      %416 = vmatmul.mubr.f32.gmra.mrb[0].mxu0 %v270
      %v417 = vpop.f32.mrb[0].mxu0
      %v418 = vadd.f32 %v222, %v417
      %v419 = vpop.f32.mrb[0].mxu0
      %420 = vdwg.mxu0
      %v421 = vmax.f32 %v343, 0.0
      %v422 = vmax.f32 %v348, 0.0
      %v423 = vmax.f32 %v353, 0.0
      %v424 = vmax.f32 %v358, 0.0
      %v425 = vmax.f32 %v363, 0.0
      %v426 = vmax.f32 %v368, 0.0
      %v427 = vmax.f32 %v373, 0.0
      %v428 = vmax.f32 %v378, 0.0
      %v429 = vmax.f32 %v383, 0.0
      %v430 = vmax.f32 %v388, 0.0
      %v431 = vmax.f32 %v393, 0.0
      %v432 = vmax.f32 %v398, 0.0
      %v433 = vmax.f32 %v403, 0.0
      %v434 = vmax.f32 %v408, 0.0
      %v435 = vmax.f32 %v413, 0.0
      %v436 = vmax.f32 %v418, 0.0
      %v437 = vld [vmem:[%s2] sm:$0xff]
      %v438 = vld [vmem:[%s2 + $0x8] sm:$0xff]
      %v439 = vld [vmem:[%s2 + $0x10] sm:$0xff]
      %v440 = vld [vmem:[%s2 + $0x18] sm:$0xff]
      %v441 = vld [vmem:[%s2 + $0x20] sm:$0xff]
      %v442 = vld [vmem:[%s2 + $0x28] sm:$0xff]
      %v443 = vld [vmem:[%s2 + $0x30] sm:$0xff]
      %v444 = vld [vmem:[%s2 + $0x38] sm:$0xff]
      %v445 = vld [vmem:[%s2 + $0x40] sm:$0xff]
      %v446 = vld [vmem:[%s2 + $0x48] sm:$0xff]
      %v447 = vld [vmem:[%s2 + $0x50] sm:$0xff]
      %v448 = vld [vmem:[%s2 + $0x58] sm:$0xff]
      %v449 = vld [vmem:[%s2 + $0x60] sm:$0xff]
      %v450 = vld [vmem:[%s2 + $0x68] sm:$0xff]
      %v451 = vld [vmem:[%s2 + $0x70] sm:$0xff]
      %v452 = vld [vmem:[%s2 + $0x78] sm:$0xff]
      %v453 = vld [vmem:[%s3 + $0x1] sm:$0x1]
      %v454 = vlaneseq
      %v455 = vshrl.u32 %v454, 7
      %v456 = vsub.s32 0, %v455
      %v457 = vrot.slane %v453, %v456
      %458 = vmatprep.subr.mxu0 0.0
      %459 = vmatpush1.msra.mxu0 %v437
      %460 = vmatprep.subr.mxu0 0.0
      %461 = vmatpush1.msra.mxu0 %v438
      %462 = vmatprep.subr.mxu0 0.0
      %463 = vmatpush1.msra.mxu0 %v439
      %464 = vmatprep.subr.mxu0 0.0
      %465 = vmatpush1.msra.mxu0 %v440
      %466 = vmatprep.subr.mxu0 0.0
      %467 = vmatpush1.msra.mxu0 %v441
      %468 = vmatprep.subr.mxu0 0.0
      %469 = vmatpush1.msra.mxu0 %v442
      %470 = vmatprep.subr.mxu0 0.0
      %471 = vmatpush1.msra.mxu0 %v443
      %472 = vmatprep.subr.mxu0 0.0
      %473 = vmatpush1.msra.mxu0 %v444
      %474 = vmatprep.subr.mxu0 0.0
      %475 = vmatpush1.msra.mxu0 %v445
      %476 = vmatprep.subr.mxu0 0.0
      %477 = vmatpush1.msra.mxu0 %v446
      %478 = vmatprep.subr.mxu0 0.0
      %479 = vmatpush1.msra.mxu0 %v447
      %480 = vmatprep.subr.mxu0 0.0
      %481 = vmatpush1.msra.mxu0 %v448
      %482 = vmatprep.subr.mxu0 0.0
      %483 = vmatpush1.msra.mxu0 %v449
      %484 = vmatprep.subr.mxu0 0.0
      %485 = vmatpush1.msra.mxu0 %v450
      %486 = vmatprep.subr.mxu0 0.0
      %487 = vmatpush1.msra.mxu0 %v451
      %488 = vmatprep.subr.mxu0 0.0
      %489 = vmatpush1.msra.mxu0 %v452
      %490 = vmatprep.subr.mxu0 0.0
      %491 = vmatpush1.msra.mxu0 0.0
      %492 = vmatprep.subr.mxu0 0.0
      %493 = vmatpush1.msra.mxu0 0.0
      %494 = vmatprep.subr.mxu0 0.0
      %495 = vmatpush1.msra.mxu0 0.0
      %496 = vmatprep.subr.mxu0 0.0
      %497 = vmatpush1.msra.mxu0 0.0
      %498 = vmatprep.subr.mxu0 0.0
      %499 = vmatpush1.msra.mxu0 0.0
      %500 = vmatprep.subr.mxu0 0.0
      %501 = vmatpush1.msra.mxu0 0.0
      %502 = vmatprep.subr.mxu0 0.0
      %503 = vmatpush1.msra.mxu0 0.0
      %504 = vmatprep.subr.mxu0 0.0
      %505 = vmatpush1.msra.mxu0 0.0
      %506 = vmatprep.subr.mxu0 0.0
      %507 = vmatpush1.msra.mxu0 0.0
      %508 = vmatprep.subr.mxu0 0.0
      %509 = vmatpush1.msra.mxu0 0.0
      %510 = vmatprep.subr.mxu0 0.0
      %511 = vmatpush1.msra.mxu0 0.0
      %512 = vmatprep.subr.mxu0 0.0
      %513 = vmatpush1.msra.mxu0 0.0
      %514 = vmatprep.subr.mxu0 0.0
      %515 = vmatpush1.msra.mxu0 0.0
      %516 = vmatprep.subr.mxu0 0.0
      %517 = vmatpush1.msra.mxu0 0.0
      %518 = vmatprep.subr.mxu0 0.0
      %519 = vmatpush1.msra.mxu0 0.0
      %520 = vmatprep.subr.mxu0 0.0
      %521 = vmatpush1.msra.mxu0 0.0
      %522 = vmatprep.mubr.f32.mxu0 0.0
      %523 = vmatmul.mubr.f32.gmra.mrb[0].mxu0 %v421
      %v524 = vpop.f32.mrb[0].mxu0
      %v525 = vadd.f32 %v457, %v524
      %v526 = vpop.f32.mrb[0].mxu0
      %527 = vmatprep.mubr.f32.mxu0 0.0
      %528 = vmatmul.mubr.f32.gmra.mrb[0].mxu0 %v422
      %v529 = vpop.f32.mrb[0].mxu0
      %v530 = vadd.f32 %v457, %v529
      %v531 = vpop.f32.mrb[0].mxu0
      %532 = vmatprep.mubr.f32.mxu0 0.0
      %533 = vmatmul.mubr.f32.gmra.mrb[0].mxu0 %v423
      %v534 = vpop.f32.mrb[0].mxu0
      %v535 = vadd.f32 %v457, %v534
      %v536 = vpop.f32.mrb[0].mxu0
      %537 = vmatprep.mubr.f32.mxu0 0.0
      %538 = vmatmul.mubr.f32.gmra.mrb[0].mxu0 %v424
      %v539 = vpop.f32.mrb[0].mxu0
      %v540 = vadd.f32 %v457, %v539
      %v541 = vpop.f32.mrb[0].mxu0
      %542 = vmatprep.mubr.f32.mxu0 0.0
      %543 = vmatmul.mubr.f32.gmra.mrb[0].mxu0 %v425
      %v544 = vpop.f32.mrb[0].mxu0
      %v545 = vadd.f32 %v457, %v544
      %v546 = vpop.f32.mrb[0].mxu0
      %547 = vmatprep.mubr.f32.mxu0 0.0
      %548 = vmatmul.mubr.f32.gmra.mrb[0].mxu0 %v426
      %v549 = vpop.f32.mrb[0].mxu0
      %v550 = vadd.f32 %v457, %v549
      %v551 = vpop.f32.mrb[0].mxu0
      %552 = vmatprep.mubr.f32.mxu0 0.0
      %553 = vmatmul.mubr.f32.gmra.mrb[0].mxu0 %v427
      %v554 = vpop.f32.mrb[0].mxu0
      %v555 = vadd.f32 %v457, %v554
      %v556 = vpop.f32.mrb[0].mxu0
      %557 = vmatprep.mubr.f32.mxu0 0.0
      %558 = vmatmul.mubr.f32.gmra.mrb[0].mxu0 %v428
      %v559 = vpop.f32.mrb[0].mxu0
      %v560 = vadd.f32 %v457, %v559
      %v561 = vpop.f32.mrb[0].mxu0
      %562 = vmatprep.mubr.f32.mxu0 0.0
      %563 = vmatmul.mubr.f32.gmra.mrb[0].mxu0 %v429
      %v564 = vpop.f32.mrb[0].mxu0
      %v565 = vadd.f32 %v457, %v564
      %v566 = vpop.f32.mrb[0].mxu0
      %567 = vmatprep.mubr.f32.mxu0 0.0
      %568 = vmatmul.mubr.f32.gmra.mrb[0].mxu0 %v430
      %v569 = vpop.f32.mrb[0].mxu0
      %v570 = vadd.f32 %v457, %v569
      %v571 = vpop.f32.mrb[0].mxu0
      %572 = vmatprep.mubr.f32.mxu0 0.0
      %573 = vmatmul.mubr.f32.gmra.mrb[0].mxu0 %v431
      %v574 = vpop.f32.mrb[0].mxu0
      %v575 = vadd.f32 %v457, %v574
      %v576 = vpop.f32.mrb[0].mxu0
      %577 = vmatprep.mubr.f32.mxu0 0.0
      %578 = vmatmul.mubr.f32.gmra.mrb[0].mxu0 %v432
      %v579 = vpop.f32.mrb[0].mxu0
      %v580 = vadd.f32 %v457, %v579
      %v581 = vpop.f32.mrb[0].mxu0
      %582 = vmatprep.mubr.f32.mxu0 0.0
      %583 = vmatmul.mubr.f32.gmra.mrb[0].mxu0 %v433
      %v584 = vpop.f32.mrb[0].mxu0
      %v585 = vadd.f32 %v457, %v584
      %v586 = vpop.f32.mrb[0].mxu0
      %587 = vmatprep.mubr.f32.mxu0 0.0
      %588 = vmatmul.mubr.f32.gmra.mrb[0].mxu0 %v434
      %v589 = vpop.f32.mrb[0].mxu0
      %v590 = vadd.f32 %v457, %v589
      %v591 = vpop.f32.mrb[0].mxu0
      %592 = vmatprep.mubr.f32.mxu0 0.0
      %593 = vmatmul.mubr.f32.gmra.mrb[0].mxu0 %v435
      %v594 = vpop.f32.mrb[0].mxu0
      %v595 = vadd.f32 %v457, %v594
      %v596 = vpop.f32.mrb[0].mxu0
      %597 = vmatprep.mubr.f32.mxu0 0.0
      %598 = vmatmul.mubr.f32.gmra.mrb[0].mxu0 %v436
      %v599 = vpop.f32.mrb[0].mxu0
      %v600 = vadd.f32 %v457, %v599
      %v601 = vpop.f32.mrb[0].mxu0
      %602 = vdwg.mxu0
      %603 = vst [vmem:[%s199] sm:$0xff] %v525
      %604 = vst [vmem:[%s199 + $0x8] sm:$0xff] %v530
      %605 = vst [vmem:[%s199 + $0x10] sm:$0xff] %v535
      %606 = vst [vmem:[%s199 + $0x18] sm:$0xff] %v540
      %607 = vst [vmem:[%s199 + $0x20] sm:$0xff] %v545
      %608 = vst [vmem:[%s199 + $0x28] sm:$0xff] %v550
      %609 = vst [vmem:[%s199 + $0x30] sm:$0xff] %v555
      %610 = vst [vmem:[%s199 + $0x38] sm:$0xff] %v560
      %611 = vst [vmem:[%s199 + $0x40] sm:$0xff] %v565
      %612 = vst [vmem:[%s199 + $0x48] sm:$0xff] %v570
      %613 = vst [vmem:[%s199 + $0x50] sm:$0xff] %v575
      %614 = vst [vmem:[%s199 + $0x58] sm:$0xff] %v580
      %615 = vst [vmem:[%s199 + $0x60] sm:$0xff] %v585
      %616 = vst [vmem:[%s199 + $0x68] sm:$0xff] %v590
      %617 = vst [vmem:[%s199 + $0x70] sm:$0xff] %v595
      %618 = vst [vmem:[%s199 + $0x78] sm:$0xff] %v600
      %s619 = smul.u32 16, %s15
      %p620 = scmp.lt.s32.totalorder %s619, 31
      %s621 = scalar_select %p620, %s619, 31
      %s622 = smul.addr %s621, 8
      %s623 = scalar_lea.vmem %s4, %s622
      // Predicated region
      $region37: #{net_forward.1} parent=35 // pred_check
        %p624 = pneg %p122
      $region38: #{net_forward.1} parent=35 // pred_check_branch
        %626 = sbr.rel (%p624) target = $region40
      $region39: #{net_forward.1} parent=35 // pred_region
        %s627 = smul.u32 16, %s15
      $region40: #{net_forward.1} parent=35 // pred_fallthru
        _
    $region36: #{net_forward.1} parent=5 // pred_fallthru
      _
    %p628 = scmp.le.s32.totalorder 2, %s10
    // Predicated region
    $region41: #{net_forward.1} parent=5 // pred_check
      %p629 = pneg %p628
    $region42: #{net_forward.1} parent=5 // pred_check_branch
      %631 = sbr.rel (%p629) target = $region44
    $region43: #{net_forward.1} parent=5 // pred_region
      %s632 = ssub.s32 %s10, 2
      // Predicated region
      $region45: #{net_forward.1} parent=43 // pred_check
        %p633 = pneg %p128
      $region46: #{net_forward.1} parent=43 // pred_check_branch
        %635 = sbr.rel (%p633) target = $region48
      $region47: #{net_forward.1} parent=43 // pred_region
        %s636 = smul.u32 16, %s16
        %p637 = scmp.lt.s32.totalorder %s636, 31
        %s638 = scalar_select %p637, %s636, 31
        %s639 = smul.addr %s638, 8
        %s640 = scalar_lea.vmem %s4, %s639
      $region48: #{net_forward.1} parent=43 // pred_fallthru
        _
    $region44: #{net_forward.1} parent=5 // pred_fallthru
      _
  $region6: #{net_forward.1} parent=0 // loop_footer
    %s14 = sadd.s32 1, %s10
  $region7: #{net_forward.1} parent=0 // loop_footer_branch
    %9 = sbr.rel target = $region3
  $region8: #{net_forward.1} parent=0 // loop_exit
    _

</llo_original>
